<compile_context>
chip_gen: v5e
topology: v5e:2x2
jax: 0.10.0
libtpu: 0.0.40
codegen_flags: <defaults>
</compile_context>

<pallas_src>
import functools

import jax
import jax.numpy as jnp
from jax import lax
from jax.experimental import pallas as pl
from jax.experimental.pallas import tpu as pltpu


def _round_up(n, m):
    return ((n + m - 1) // m) * m


def _vmem_limit_bytes():
    # ~80% of physical VMEM: ~102 MiB on v5e/v6e (128 MiB), ~51 MiB on v7x (64 MiB).
    cap = None
    try:
        cap = getattr(pltpu.get_tpu_info(), "vmem_capacity_bytes", None)
    except Exception:
        cap = None
    if not cap:
        cap = 64 * 1024 * 1024  # conservative fallback
    return int(cap * 0.8)


# ------------------------------ fused attention kernel -------------------------------

def _attention_kernel(x_ref, ctx_ref, wq_ref, wkT_ref, wv_ref, wo_ref, bo_ref,
                      out_ref, amax_ref, *, heads, dim_head,
                      compute_dtype, approx_recip):
    """One batch element per grid step; all heads computed in-kernel.

    x_ref:    (1, N, C)      query-side activations
    ctx_ref:  (1, M, Cc)     context activations
    wq_ref:   (C, H*D)       Wq with the softmax scale pre-folded
    wkT_ref:  (H*D, Cc)      Wk, pre-transposed (torch-native layout)
    wv_ref:   (Cc, H*D)
    wo_ref:   (H*D, Co_pad)  output projection (lane-padded)
    bo_ref:   (1, Co_pad)    output bias (lane-padded, f32)
    out_ref:  (1, N, Co_pad)
    amax_ref: (1, N, M_pad)  max-over-heads attention map (lane-padded)
    """
    N = x_ref.shape[1]
    M = ctx_ref.shape[1]
    M_pad = amax_ref.shape[2]
    D = dim_head

    x = x_ref[0].astype(compute_dtype)       # (N, C)
    ctx = ctx_ref[0].astype(compute_dtype)   # (M, Cc)
    wq = wq_ref[...].astype(compute_dtype)
    wkT = wkT_ref[...].astype(compute_dtype)
    wv = wv_ref[...].astype(compute_dtype)
    wo = wo_ref[...].astype(compute_dtype)

    # All-heads projections: lane-dense (H*D)-wide MXU matmuls, f32 accumulation.
    q_all = jnp.dot(x, wq, preferred_element_type=jnp.float32).astype(compute_dtype)   # (N, H*D)
    # K produced already transposed -> per-head QK^T below is a plain NN matmul.
    kT_all = lax.dot_general(wkT, ctx, (((1,), (1,)), ((), ())),
                             preferred_element_type=jnp.float32).astype(compute_dtype)  # (H*D, M)
    v_all = jnp.dot(ctx, wv, preferred_element_type=jnp.float32).astype(compute_dtype)  # (M, H*D)

    def _recip(t):
        if approx_recip:
            return pl.reciprocal(t, approx=True)   # EUP slot, nearly free
        return 1.0 / t

    outs = []
    amax = None
    # Static (trace-time unrolled) head loop: all slices are compile-time constants.
    for h in range(heads):
        q_h = q_all[:, h * D:(h + 1) * D]      # (N, D)
        kT_h = kT_all[h * D:(h + 1) * D, :]    # (D, M)
        v_h = v_all[:, h * D:(h + 1) * D]      # (M, D)

        # Scale already folded into Wq.
        sim = jnp.dot(q_h, kT_h, preferred_element_type=jnp.float32)  # (N, M)

        # torch: sim.softmax(dim=1) on (b*h, i, j) => softmax over the QUERY axis (axis 0).
        col_max = jnp.max(sim, axis=0, keepdims=True)
        e = jnp.exp(sim - col_max)
        attn = e * _recip(jnp.sum(e, axis=0, keepdims=True))
        # torch: attn / (attn.sum(dim=-1, keepdim=True) + 1e-7)  (renormalize over keys).
        attn = attn * _recip(jnp.sum(attn, axis=-1, keepdims=True) + 1e-7)

        amax = attn if amax is None else jnp.maximum(amax, attn)
        outs.append(jnp.dot(attn.astype(compute_dtype), v_h,
                            preferred_element_type=jnp.float32))      # (N, D)

    # Single output projection: concat_h(out_h) @ Wo  (contraction depth H*D, lane-dense).
    out_cat = (outs[0] if heads == 1 else jnp.concatenate(outs, axis=-1)).astype(compute_dtype)
    proj = jnp.dot(out_cat, wo, preferred_element_type=jnp.float32) + bo_ref[...]
    out_ref[0] = proj.astype(out_ref.dtype)

    # Lane-dense store of the max-over-heads attention map (zero-pad beyond real M).
    if M_pad > M:
        amax = jnp.concatenate([amax, jnp.zeros((N, M_pad - M), jnp.float32)], axis=-1)
    amax_ref[0] = amax.astype(amax_ref.dtype)


# ---------------------------------- host wrappers -------------------------------------

def prepare_params(params, *, heads, dim_head, compute_dtype=jnp.bfloat16):
    """One-time parameter relayout: fold the softmax scale into Wq, pre-transpose Wk,
    lane-pad the output projection to a multiple of 128, and cast MXU operands."""
    del heads  # full-width weights are used directly; no per-head slabs needed
    scale = dim_head ** (-0.5)
    c_out = params["wo"].shape[1]
    c_out_pad = _round_up(c_out, 128)

    wo = params["wo"]
    bo = params["bo"]
    if c_out_pad > c_out:
        wo = jnp.pad(wo, ((0, 0), (0, c_out_pad - c_out)))
        bo = jnp.pad(bo, (0, c_out_pad - c_out))

    return {
        "wq": (params["wq"] * scale).astype(compute_dtype),   # (C, H*D), scale folded in
        "wkT": params["wk"].T.astype(compute_dtype),           # (H*D, Cc)
        "wv": params["wv"].astype(compute_dtype),              # (Cc, H*D)
        "wo": wo.astype(compute_dtype),                        # (H*D, Co_pad)
        "bo": bo.reshape(1, c_out_pad).astype(jnp.float32),    # (1, Co_pad)
        "c_out": c_out,
        "compute_dtype": compute_dtype,
    }


def attention_forward(x, prepped, *, heads, dim_head, context=None, approx_recip=None):
    """Equivalent to Attention.forward(x, context) with mask/k_pos/q_pos = None (eval)."""
    ctx = x if context is None else context
    B, N, C = x.shape
    M, Cc = ctx.shape[1], ctx.shape[2]
    HD = heads * dim_head
    c_out = prepped["c_out"]
    c_out_pad = prepped["wo"].shape[1]
    m_pad = _round_up(M, 128)
    compute_dtype = prepped["compute_dtype"]
    if approx_recip is None:
        approx_recip = jnp.dtype(compute_dtype) != jnp.dtype(jnp.float32)

    kern = functools.partial(
        _attention_kernel, heads=heads, dim_head=dim_head,
        compute_dtype=compute_dtype, approx_recip=approx_recip)

    out_pad, amax_pad = pl.pallas_call(
        kern,
        out_shape=(
            jax.ShapeDtypeStruct((B, N, c_out_pad), x.dtype),
            jax.ShapeDtypeStruct((B, N, m_pad), jnp.float32),
        ),
        grid=(B,),
        in_specs=[
            pl.BlockSpec((1, N, C), lambda b: (b, 0, 0)),       # x
            pl.BlockSpec((1, M, Cc), lambda b: (b, 0, 0)),      # context
            pl.BlockSpec((C, HD), lambda b: (0, 0)),            # wq (resident across b)
            pl.BlockSpec((HD, Cc), lambda b: (0, 0)),           # wkT
            pl.BlockSpec((Cc, HD), lambda b: (0, 0)),           # wv
            pl.BlockSpec((HD, c_out_pad), lambda b: (0, 0)),    # wo
            pl.BlockSpec((1, c_out_pad), lambda b: (0, 0)),     # bo
        ],
        out_specs=(
            pl.BlockSpec((1, N, c_out_pad), lambda b: (b, 0, 0)),
            pl.BlockSpec((1, N, m_pad), lambda b: (b, 0, 0)),
        ),
        compiler_params=pltpu.CompilerParams(
            dimension_semantics=("parallel",),
            vmem_limit_bytes=_vmem_limit_bytes(),
        ),
    )(x, ctx, prepped["wq"], prepped["wkT"], prepped["wv"], prepped["wo"], prepped["bo"])

    # Strip the lane padding added for dense stores.
    return out_pad[..., :c_out], amax_pad[..., :M]


# -------------------------------- pure-JAX reference ---------------------------------

def reference_forward(x, params, *, heads, dim_head, context=None):
    ctx = x if context is None else context
    B, N, _ = x.shape
    M = ctx.shape[1]
    inner = heads * dim_head
    scale = dim_head ** (-0.5)

    q = x @ params["wq"]
    k = ctx @ params["wk"]
    v = ctx @ params["wv"]

    def split(t, L):
        return t.reshape(B, L, heads, dim_head).transpose(0, 2, 1, 3).reshape(
            B * heads, L, dim_head)

    q, k, v = split(q, N), split(k, M), split(v, M)
    sim = jnp.einsum("bid,bjd->bij", q, k) * scale
    attn = jax.nn.softmax(sim, axis=1)                      # softmax over the query axis
    attn = attn / (attn.sum(axis=-1, keepdims=True) + 1e-7)
    out = jnp.einsum("bij,bjd->bid", attn, v)
    out = out.reshape(B, heads, N, dim_head).transpose(0, 2, 1, 3).reshape(B, N, inner)
    attn = attn.reshape(B, heads, N, M).max(axis=1)
    return out @ params["wo"] + params["bo"], attn


# --------------------------------------- main ----------------------------------------

if __name__ == "__main__":
    query_dim = 32
    heads = 4
    dim_head = 16
    inner_dim = heads * dim_head
    B, N = 2, 8
    M_ctx = 16  # cross-attention context length

    key = jax.random.PRNGKey(0)
    kx, kc, kq, kk, kv, ko, kb = jax.random.split(key, 7)

    x = jax.random.normal(kx, (B, N, query_dim), dtype=jnp.float32)
    ctx = jax.random.normal(kc, (B, M_ctx, query_dim), dtype=jnp.float32)

    params = {
        # stored as (in_features, out_features) so forward is x @ W (== torch x @ W.T)
        "wq": 0.05 * jax.random.normal(kq, (query_dim, inner_dim), dtype=jnp.float32),
        "wk": 0.05 * jax.random.normal(kk, (query_dim, inner_dim), dtype=jnp.float32),
        "wv": 0.05 * jax.random.normal(kv, (query_dim, inner_dim), dtype=jnp.float32),
        "wo": 0.05 * jax.random.normal(ko, (inner_dim, query_dim), dtype=jnp.float32),
        "bo": 0.01 * jax.random.normal(kb, (query_dim,), dtype=jnp.float32),
    }

    prepped_f32 = prepare_params(params, heads=heads, dim_head=dim_head,
                                 compute_dtype=jnp.float32)
    prepped_bf16 = prepare_params(params, heads=heads, dim_head=dim_head,
                                  compute_dtype=jnp.bfloat16)

    # ---- self-attention, precise (f32 MXU) path ----
    out, attn = attention_forward(x, prepped_f32, heads=heads, dim_head=dim_head)
    out = jax.block_until_ready(out)
    attn = jax.block_until_ready(attn)
    out_ref, attn_ref = reference_forward(x, params, heads=heads, dim_head=dim_head)
    assert out.shape == (B, N, query_dim) and attn.shape == (B, N, N)
    assert jnp.allclose(out, out_ref, atol=1e-4, rtol=1e-4), "self-attn output mismatch"
    assert jnp.allclose(attn, attn_ref, atol=1e-4, rtol=1e-4), "self-attn attn mismatch"

    # ---- cross-attention, precise (f32 MXU) path ----
    out_c, attn_c = attention_forward(
        x, prepped_f32, heads=heads, dim_head=dim_head, context=ctx)
    out_c = jax.block_until_ready(out_c)
    attn_c = jax.block_until_ready(attn_c)
    out_cr, attn_cr = reference_forward(
        x, params, heads=heads, dim_head=dim_head, context=ctx)
    assert out_c.shape == (B, N, query_dim) and attn_c.shape == (B, N, M_ctx)
    assert jnp.allclose(out_c, out_cr, atol=1e-4, rtol=1e-4), "cross-attn output mismatch"
    assert jnp.allclose(attn_c, attn_cr, atol=1e-4, rtol=1e-4), "cross-attn attn mismatch"

    # ---- self-attention, fast (bf16 MXU + approx reciprocal) path ----
    out_f, attn_f = attention_forward(x, prepped_bf16, heads=heads, dim_head=dim_head)
    out_f = jax.block_until_ready(out_f)
    attn_f = jax.block_until_ready(attn_f)
    assert out_f.shape == (B, N, query_dim) and attn_f.shape == (B, N, N)
    assert jnp.allclose(out_f, out_ref, atol=5e-2, rtol=5e-2), "bf16 output mismatch"
    assert jnp.allclose(attn_f, attn_ref, atol=5e-2, rtol=5e-2), "bf16 attn mismatch"

    print("KERNEL_OK")
</pallas_src>

<mosaic_0001>
module attributes {stable_mosaic.version = 11 : i64} {
  func.func @_attention_kernel(%arg0: i32, %arg1: memref<1x8x32xf32, #tpu.memory_space<vmem>>, %arg2: memref<1x8x32xf32, #tpu.memory_space<vmem>>, %arg3: memref<32x64xf32, #tpu.memory_space<vmem>>, %arg4: memref<64x32xf32, #tpu.memory_space<vmem>>, %arg5: memref<32x64xf32, #tpu.memory_space<vmem>>, %arg6: memref<64x128xf32, #tpu.memory_space<vmem>>, %arg7: memref<1x128xf32, #tpu.memory_space<vmem>>, %arg8: memref<1x8x128xf32, #tpu.memory_space<vmem>>, %arg9: memref<1x8x128xf32, #tpu.memory_space<vmem>>) attributes {dimension_semantics = [#tpu.dimension_semantics<parallel>], iteration_bounds = array<i64: 2>, scalar_prefetch = 0 : i64, scratch_operands = 0 : i64, tpu.core_type = #tpu.core_type<tc>, window_params = [{transform_indices = @transform_0, window_bounds = array<i64: 1, 8, 32>}, {transform_indices = @transform_1, window_bounds = array<i64: 1, 8, 32>}, {pipeline_mode = #tpu.pipeline_mode<synchronous>, transform_indices = @transform_2, window_bounds = array<i64: 32, 64>}, {pipeline_mode = #tpu.pipeline_mode<synchronous>, transform_indices = @transform_3, window_bounds = array<i64: 64, 32>}, {pipeline_mode = #tpu.pipeline_mode<synchronous>, transform_indices = @transform_4, window_bounds = array<i64: 32, 64>}, {pipeline_mode = #tpu.pipeline_mode<synchronous>, transform_indices = @transform_5, window_bounds = array<i64: 64, 128>}, {pipeline_mode = #tpu.pipeline_mode<synchronous>, transform_indices = @transform_6, window_bounds = array<i64: 1, 128>}, {transform_indices = @transform_7, window_bounds = array<i64: 1, 8, 128>}, {transform_indices = @transform_8, window_bounds = array<i64: 1, 8, 128>}]} {
    %c0 = arith.constant 0 : index
    %c0_0 = arith.constant 0 : index
    %c0_1 = arith.constant 0 : index
    %0 = vector.load %arg1[%c0, %c0_0, %c0_1] : memref<1x8x32xf32, #tpu.memory_space<vmem>>, vector<1x8x32xf32>
    %1 = vector.shape_cast %0 : vector<1x8x32xf32> to vector<8x32xf32>
    %c0_2 = arith.constant 0 : index
    %c0_3 = arith.constant 0 : index
    %c0_4 = arith.constant 0 : index
    %2 = vector.load %arg2[%c0_2, %c0_3, %c0_4] : memref<1x8x32xf32, #tpu.memory_space<vmem>>, vector<1x8x32xf32>
    %3 = vector.shape_cast %2 : vector<1x8x32xf32> to vector<8x32xf32>
    %c0_5 = arith.constant 0 : index
    %c0_6 = arith.constant 0 : index
    %4 = vector.load %arg3[%c0_5, %c0_6] : memref<32x64xf32, #tpu.memory_space<vmem>>, vector<32x64xf32>
    %c0_7 = arith.constant 0 : index
    %c0_8 = arith.constant 0 : index
    %5 = vector.load %arg4[%c0_7, %c0_8] : memref<64x32xf32, #tpu.memory_space<vmem>>, vector<64x32xf32>
    %c0_9 = arith.constant 0 : index
    %c0_10 = arith.constant 0 : index
    %6 = vector.load %arg5[%c0_9, %c0_10] : memref<32x64xf32, #tpu.memory_space<vmem>>, vector<32x64xf32>
    %c0_11 = arith.constant 0 : index
    %c0_12 = arith.constant 0 : index
    %7 = vector.load %arg6[%c0_11, %c0_12] : memref<64x128xf32, #tpu.memory_space<vmem>>, vector<64x128xf32>
    %cst = arith.constant dense<0.000000e+00> : vector<8x64xf32>
    %8 = tpu.matmul %1, %4, %cst {dimension_numbers = #tpu.dot_dimension_numbers<[1], [0], [0], [1], [0, 0, 1, 1], [], []>} : vector<8x32xf32>, vector<32x64xf32>, vector<8x64xf32> -> vector<8x64xf32>
    %cst_13 = arith.constant dense<0.000000e+00> : vector<64x8xf32>
    %9 = tpu.matmul %5, %3, %cst_13 {dimension_numbers = #tpu.dot_dimension_numbers<[1], [1], [0], [0], [0, 0, 1, 0], [], []>} : vector<64x32xf32>, vector<8x32xf32>, vector<64x8xf32> -> vector<64x8xf32>
    %cst_14 = arith.constant dense<0.000000e+00> : vector<8x64xf32>
    %10 = tpu.matmul %3, %6, %cst_14 {dimension_numbers = #tpu.dot_dimension_numbers<[1], [0], [0], [1], [0, 0, 1, 1], [], []>} : vector<8x32xf32>, vector<32x64xf32>, vector<8x64xf32> -> vector<8x64xf32>
    %11 = vector.extract_strided_slice %8 {offsets = [0, 0], sizes = [8, 16], strides = [1, 1]} : vector<8x64xf32> to vector<8x16xf32>
    %12 = vector.extract_strided_slice %9 {offsets = [0, 0], sizes = [16, 8], strides = [1, 1]} : vector<64x8xf32> to vector<16x8xf32>
    %13 = vector.extract_strided_slice %10 {offsets = [0, 0], sizes = [8, 16], strides = [1, 1]} : vector<8x64xf32> to vector<8x16xf32>
    %cst_15 = arith.constant dense<0.000000e+00> : vector<8x8xf32>
    %14 = tpu.matmul %11, %12, %cst_15 {dimension_numbers = #tpu.dot_dimension_numbers<[1], [0], [0], [1], [0, 0, 1, 1], [], []>} : vector<8x16xf32>, vector<16x8xf32>, vector<8x8xf32> -> vector<8x8xf32>
    %cst_16 = arith.constant dense<0xFF800000> : vector<8xf32>
    %15 = vector.multi_reduction <maximumf>, %14, %cst_16 [0] : vector<8x8xf32> to vector<8xf32>
    %16 = vector.shape_cast %15 : vector<8xf32> to vector<1x8xf32>
    %17 = vector.broadcast %16 : vector<1x8xf32> to vector<8x8xf32>
    %18 = arith.subf %14, %17 : vector<8x8xf32>
    %19 = math.exp %18 : vector<8x8xf32>
    %cst_17 = arith.constant dense<0.000000e+00> : vector<8xf32>
    %20 = vector.multi_reduction <add>, %19, %cst_17 [0] : vector<8x8xf32> to vector<8xf32>
    %21 = vector.shape_cast %20 : vector<8xf32> to vector<1x8xf32>
    %cst_18 = arith.constant 1.000000e+00 : f32
    %22 = vector.broadcast %cst_18 : f32 to vector<1x8xf32>
    %23 = arith.divf %22, %21 : vector<1x8xf32>
    %24 = vector.broadcast %23 : vector<1x8xf32> to vector<8x8xf32>
    %25 = arith.mulf %19, %24 : vector<8x8xf32>
    %cst_19 = arith.constant dense<0.000000e+00> : vector<8xf32>
    %26 = vector.multi_reduction <add>, %25, %cst_19 [1] : vector<8x8xf32> to vector<8xf32>
    %27 = vector.shape_cast %26 : vector<8xf32> to vector<8x1xf32>
    %cst_20 = arith.constant 1.000000e-07 : f32
    %28 = vector.broadcast %cst_20 : f32 to vector<8x1xf32>
    %29 = arith.addf %27, %28 : vector<8x1xf32>
    %cst_21 = arith.constant 1.000000e+00 : f32
    %30 = vector.broadcast %cst_21 : f32 to vector<8x1xf32>
    %31 = arith.divf %30, %29 : vector<8x1xf32>
    %32 = vector.broadcast %31 : vector<8x1xf32> to vector<8x8xf32>
    %33 = arith.mulf %25, %32 : vector<8x8xf32>
    %cst_22 = arith.constant dense<0.000000e+00> : vector<8x16xf32>
    %34 = tpu.matmul %33, %13, %cst_22 {dimension_numbers = #tpu.dot_dimension_numbers<[1], [0], [0], [1], [0, 0, 1, 1], [], []>} : vector<8x8xf32>, vector<8x16xf32>, vector<8x16xf32> -> vector<8x16xf32>
    %35 = vector.extract_strided_slice %8 {offsets = [0, 16], sizes = [8, 16], strides = [1, 1]} : vector<8x64xf32> to vector<8x16xf32>
    %36 = vector.extract_strided_slice %9 {offsets = [16, 0], sizes = [16, 8], strides = [1, 1]} : vector<64x8xf32> to vector<16x8xf32>
    %37 = vector.extract_strided_slice %10 {offsets = [0, 16], sizes = [8, 16], strides = [1, 1]} : vector<8x64xf32> to vector<8x16xf32>
    %cst_23 = arith.constant dense<0.000000e+00> : vector<8x8xf32>
    %38 = tpu.matmul %35, %36, %cst_23 {dimension_numbers = #tpu.dot_dimension_numbers<[1], [0], [0], [1], [0, 0, 1, 1], [], []>} : vector<8x16xf32>, vector<16x8xf32>, vector<8x8xf32> -> vector<8x8xf32>
    %cst_24 = arith.constant dense<0xFF800000> : vector<8xf32>
    %39 = vector.multi_reduction <maximumf>, %38, %cst_24 [0] : vector<8x8xf32> to vector<8xf32>
    %40 = vector.shape_cast %39 : vector<8xf32> to vector<1x8xf32>
    %41 = vector.broadcast %40 : vector<1x8xf32> to vector<8x8xf32>
    %42 = arith.subf %38, %41 : vector<8x8xf32>
    %43 = math.exp %42 : vector<8x8xf32>
    %cst_25 = arith.constant dense<0.000000e+00> : vector<8xf32>
    %44 = vector.multi_reduction <add>, %43, %cst_25 [0] : vector<8x8xf32> to vector<8xf32>
    %45 = vector.shape_cast %44 : vector<8xf32> to vector<1x8xf32>
    %cst_26 = arith.constant 1.000000e+00 : f32
    %46 = vector.broadcast %cst_26 : f32 to vector<1x8xf32>
    %47 = arith.divf %46, %45 : vector<1x8xf32>
    %48 = vector.broadcast %47 : vector<1x8xf32> to vector<8x8xf32>
    %49 = arith.mulf %43, %48 : vector<8x8xf32>
    %cst_27 = arith.constant dense<0.000000e+00> : vector<8xf32>
    %50 = vector.multi_reduction <add>, %49, %cst_27 [1] : vector<8x8xf32> to vector<8xf32>
    %51 = vector.shape_cast %50 : vector<8xf32> to vector<8x1xf32>
    %cst_28 = arith.constant 1.000000e-07 : f32
    %52 = vector.broadcast %cst_28 : f32 to vector<8x1xf32>
    %53 = arith.addf %51, %52 : vector<8x1xf32>
    %cst_29 = arith.constant 1.000000e+00 : f32
    %54 = vector.broadcast %cst_29 : f32 to vector<8x1xf32>
    %55 = arith.divf %54, %53 : vector<8x1xf32>
    %56 = vector.broadcast %55 : vector<8x1xf32> to vector<8x8xf32>
    %57 = arith.mulf %49, %56 : vector<8x8xf32>
    %58 = arith.maximumf %33, %57 : vector<8x8xf32>
    %cst_30 = arith.constant dense<0.000000e+00> : vector<8x16xf32>
    %59 = tpu.matmul %57, %37, %cst_30 {dimension_numbers = #tpu.dot_dimension_numbers<[1], [0], [0], [1], [0, 0, 1, 1], [], []>} : vector<8x8xf32>, vector<8x16xf32>, vector<8x16xf32> -> vector<8x16xf32>
    %60 = vector.extract_strided_slice %8 {offsets = [0, 32], sizes = [8, 16], strides = [1, 1]} : vector<8x64xf32> to vector<8x16xf32>
    %61 = vector.extract_strided_slice %9 {offsets = [32, 0], sizes = [16, 8], strides = [1, 1]} : vector<64x8xf32> to vector<16x8xf32>
    %62 = vector.extract_strided_slice %10 {offsets = [0, 32], sizes = [8, 16], strides = [1, 1]} : vector<8x64xf32> to vector<8x16xf32>
    %cst_31 = arith.constant dense<0.000000e+00> : vector<8x8xf32>
    %63 = tpu.matmul %60, %61, %cst_31 {dimension_numbers = #tpu.dot_dimension_numbers<[1], [0], [0], [1], [0, 0, 1, 1], [], []>} : vector<8x16xf32>, vector<16x8xf32>, vector<8x8xf32> -> vector<8x8xf32>
    %cst_32 = arith.constant dense<0xFF800000> : vector<8xf32>
    %64 = vector.multi_reduction <maximumf>, %63, %cst_32 [0] : vector<8x8xf32> to vector<8xf32>
    %65 = vector.shape_cast %64 : vector<8xf32> to vector<1x8xf32>
    %66 = vector.broadcast %65 : vector<1x8xf32> to vector<8x8xf32>
    %67 = arith.subf %63, %66 : vector<8x8xf32>
    %68 = math.exp %67 : vector<8x8xf32>
    %cst_33 = arith.constant dense<0.000000e+00> : vector<8xf32>
    %69 = vector.multi_reduction <add>, %68, %cst_33 [0] : vector<8x8xf32> to vector<8xf32>
    %70 = vector.shape_cast %69 : vector<8xf32> to vector<1x8xf32>
    %cst_34 = arith.constant 1.000000e+00 : f32
    %71 = vector.broadcast %cst_34 : f32 to vector<1x8xf32>
    %72 = arith.divf %71, %70 : vector<1x8xf32>
    %73 = vector.broadcast %72 : vector<1x8xf32> to vector<8x8xf32>
    %74 = arith.mulf %68, %73 : vector<8x8xf32>
    %cst_35 = arith.constant dense<0.000000e+00> : vector<8xf32>
    %75 = vector.multi_reduction <add>, %74, %cst_35 [1] : vector<8x8xf32> to vector<8xf32>
    %76 = vector.shape_cast %75 : vector<8xf32> to vector<8x1xf32>
    %cst_36 = arith.constant 1.000000e-07 : f32
    %77 = vector.broadcast %cst_36 : f32 to vector<8x1xf32>
    %78 = arith.addf %76, %77 : vector<8x1xf32>
    %cst_37 = arith.constant 1.000000e+00 : f32
    %79 = vector.broadcast %cst_37 : f32 to vector<8x1xf32>
    %80 = arith.divf %79, %78 : vector<8x1xf32>
    %81 = vector.broadcast %80 : vector<8x1xf32> to vector<8x8xf32>
    %82 = arith.mulf %74, %81 : vector<8x8xf32>
    %83 = arith.maximumf %58, %82 : vector<8x8xf32>
    %cst_38 = arith.constant dense<0.000000e+00> : vector<8x16xf32>
    %84 = tpu.matmul %82, %62, %cst_38 {dimension_numbers = #tpu.dot_dimension_numbers<[1], [0], [0], [1], [0, 0, 1, 1], [], []>} : vector<8x8xf32>, vector<8x16xf32>, vector<8x16xf32> -> vector<8x16xf32>
    %85 = vector.extract_strided_slice %8 {offsets = [0, 48], sizes = [8, 16], strides = [1, 1]} : vector<8x64xf32> to vector<8x16xf32>
    %86 = vector.extract_strided_slice %9 {offsets = [48, 0], sizes = [16, 8], strides = [1, 1]} : vector<64x8xf32> to vector<16x8xf32>
    %87 = vector.extract_strided_slice %10 {offsets = [0, 48], sizes = [8, 16], strides = [1, 1]} : vector<8x64xf32> to vector<8x16xf32>
    %cst_39 = arith.constant dense<0.000000e+00> : vector<8x8xf32>
    %88 = tpu.matmul %85, %86, %cst_39 {dimension_numbers = #tpu.dot_dimension_numbers<[1], [0], [0], [1], [0, 0, 1, 1], [], []>} : vector<8x16xf32>, vector<16x8xf32>, vector<8x8xf32> -> vector<8x8xf32>
    %cst_40 = arith.constant dense<0xFF800000> : vector<8xf32>
    %89 = vector.multi_reduction <maximumf>, %88, %cst_40 [0] : vector<8x8xf32> to vector<8xf32>
    %90 = vector.shape_cast %89 : vector<8xf32> to vector<1x8xf32>
    %91 = vector.broadcast %90 : vector<1x8xf32> to vector<8x8xf32>
    %92 = arith.subf %88, %91 : vector<8x8xf32>
    %93 = math.exp %92 : vector<8x8xf32>
    %cst_41 = arith.constant dense<0.000000e+00> : vector<8xf32>
    %94 = vector.multi_reduction <add>, %93, %cst_41 [0] : vector<8x8xf32> to vector<8xf32>
    %95 = vector.shape_cast %94 : vector<8xf32> to vector<1x8xf32>
    %cst_42 = arith.constant 1.000000e+00 : f32
    %96 = vector.broadcast %cst_42 : f32 to vector<1x8xf32>
    %97 = arith.divf %96, %95 : vector<1x8xf32>
    %98 = vector.broadcast %97 : vector<1x8xf32> to vector<8x8xf32>
    %99 = arith.mulf %93, %98 : vector<8x8xf32>
    %cst_43 = arith.constant dense<0.000000e+00> : vector<8xf32>
    %100 = vector.multi_reduction <add>, %99, %cst_43 [1] : vector<8x8xf32> to vector<8xf32>
    %101 = vector.shape_cast %100 : vector<8xf32> to vector<8x1xf32>
    %cst_44 = arith.constant 1.000000e-07 : f32
    %102 = vector.broadcast %cst_44 : f32 to vector<8x1xf32>
    %103 = arith.addf %101, %102 : vector<8x1xf32>
    %cst_45 = arith.constant 1.000000e+00 : f32
    %104 = vector.broadcast %cst_45 : f32 to vector<8x1xf32>
    %105 = arith.divf %104, %103 : vector<8x1xf32>
    %106 = vector.broadcast %105 : vector<8x1xf32> to vector<8x8xf32>
    %107 = arith.mulf %99, %106 : vector<8x8xf32>
    %108 = arith.maximumf %83, %107 : vector<8x8xf32>
    %cst_46 = arith.constant dense<0.000000e+00> : vector<8x16xf32>
    %109 = tpu.matmul %107, %87, %cst_46 {dimension_numbers = #tpu.dot_dimension_numbers<[1], [0], [0], [1], [0, 0, 1, 1], [], []>} : vector<8x8xf32>, vector<8x16xf32>, vector<8x16xf32> -> vector<8x16xf32>
    %110 = tpu.concatenate %34, %59, %84, %109 in 1 : vector<8x16xf32>, vector<8x16xf32>, vector<8x16xf32>, vector<8x16xf32> -> vector<8x64xf32>
    %cst_47 = arith.constant dense<0.000000e+00> : vector<8x128xf32>
    %111 = tpu.matmul %110, %7, %cst_47 {dimension_numbers = #tpu.dot_dimension_numbers<[1], [0], [0], [1], [0, 0, 1, 1], [], []>} : vector<8x64xf32>, vector<64x128xf32>, vector<8x128xf32> -> vector<8x128xf32>
    %c0_48 = arith.constant 0 : index
    %c0_49 = arith.constant 0 : index
    %112 = vector.load %arg7[%c0_48, %c0_49] : memref<1x128xf32, #tpu.memory_space<vmem>>, vector<1x128xf32>
    %113 = vector.broadcast %112 : vector<1x128xf32> to vector<8x128xf32>
    %114 = arith.addf %111, %113 : vector<8x128xf32>
    %c0_50 = arith.constant 0 : index
    %c0_51 = arith.constant 0 : index
    %c0_52 = arith.constant 0 : index
    %115 = vector.load %arg8[%c0_50, %c0_51, %c0_52] : memref<1x8x128xf32, #tpu.memory_space<vmem>>, vector<1x8x128xf32>
    %116 = vector.shape_cast %115 : vector<1x8x128xf32> to vector<8x128xf32>
    %117 = vector.shape_cast %114 : vector<8x128xf32> to vector<1x8x128xf32>
    tpu.vector_store %arg8[%c0_50, %c0_51, %c0_52], %117 {strides = array<i32>} : memref<1x8x128xf32, #tpu.memory_space<vmem>>, vector<1x8x128xf32>,
    %cst_53 = arith.constant 0.000000e+00 : f32
    %118 = vector.broadcast %cst_53 : f32 to vector<8x120xf32>
    %119 = tpu.concatenate %108, %118 in 1 : vector<8x8xf32>, vector<8x120xf32> -> vector<8x128xf32>
    %c0_54 = arith.constant 0 : index
    %c0_55 = arith.constant 0 : index
    %c0_56 = arith.constant 0 : index
    %120 = vector.load %arg9[%c0_54, %c0_55, %c0_56] : memref<1x8x128xf32, #tpu.memory_space<vmem>>, vector<1x8x128xf32>
    %121 = vector.shape_cast %120 : vector<1x8x128xf32> to vector<8x128xf32>
    %122 = vector.shape_cast %119 : vector<8x128xf32> to vector<1x8x128xf32>
    tpu.vector_store %arg9[%c0_54, %c0_55, %c0_56], %122 {strides = array<i32>} : memref<1x8x128xf32, #tpu.memory_space<vmem>>, vector<1x8x128xf32>,
    return
  }
  func.func @transform_0(%arg0: i32) -> (i32, i32, i32) {
    %c0_i32 = arith.constant 0 : i32
    %c0_i32_0 = arith.constant 0 : i32
    %c0_i32_1 = arith.constant 0 : i32
    return %arg0, %c0_i32, %c0_i32_0 : i32, i32, i32
  }
  func.func @transform_1(%arg0: i32) -> (i32, i32, i32) {
    %c0_i32 = arith.constant 0 : i32
    %c0_i32_0 = arith.constant 0 : i32
    %c0_i32_1 = arith.constant 0 : i32
    return %arg0, %c0_i32, %c0_i32_0 : i32, i32, i32
  }
  func.func @transform_2(%arg0: i32) -> (i32, i32) {
    %c0_i32 = arith.constant 0 : i32
    %c0_i32_0 = arith.constant 0 : i32
    %c0_i32_1 = arith.constant 0 : i32
    return %c0_i32, %c0_i32_0 : i32, i32
  }
  func.func @transform_3(%arg0: i32) -> (i32, i32) {
    %c0_i32 = arith.constant 0 : i32
    %c0_i32_0 = arith.constant 0 : i32
    %c0_i32_1 = arith.constant 0 : i32
    return %c0_i32, %c0_i32_0 : i32, i32
  }
  func.func @transform_4(%arg0: i32) -> (i32, i32) {
    %c0_i32 = arith.constant 0 : i32
    %c0_i32_0 = arith.constant 0 : i32
    %c0_i32_1 = arith.constant 0 : i32
    return %c0_i32, %c0_i32_0 : i32, i32
  }
  func.func @transform_5(%arg0: i32) -> (i32, i32) {
    %c0_i32 = arith.constant 0 : i32
    %c0_i32_0 = arith.constant 0 : i32
    %c0_i32_1 = arith.constant 0 : i32
    return %c0_i32, %c0_i32_0 : i32, i32
  }
  func.func @transform_6(%arg0: i32) -> (i32, i32) {
    %c0_i32 = arith.constant 0 : i32
    %c0_i32_0 = arith.constant 0 : i32
    %c0_i32_1 = arith.constant 0 : i32
    return %c0_i32, %c0_i32_0 : i32, i32
  }
  func.func @transform_7(%arg0: i32) -> (i32, i32, i32) {
    %c0_i32 = arith.constant 0 : i32
    %c0_i32_0 = arith.constant 0 : i32
    %c0_i32_1 = arith.constant 0 : i32
    return %arg0, %c0_i32, %c0_i32_0 : i32, i32, i32
  }
  func.func @transform_8(%arg0: i32) -> (i32, i32, i32) {
    %c0_i32 = arith.constant 0 : i32
    %c0_i32_0 = arith.constant 0 : i32
    %c0_i32_1 = arith.constant 0 : i32
    return %arg0, %c0_i32, %c0_i32_0 : i32, i32, i32
  }
}

</mosaic_0001>

<llo_original>
// kernel: tpu_custom_call.1
$region0: #{tpu_custom_call.1}
  #allocation0 [shape = 'u32[]', space=smem, size = 0x4, offset = 0x4, fixed_abs, tag = 'smem constant byte address 0x4 - core index']
  #allocation1 [shape = 'u32[72,128]{1,0:T(1,128)}', space=vmem, size = 0x9000, scoped, tag = 'internal scratch']
  %s0 = inlined_call_operand.hbm [shape: f32[2,8,32], index: 0, kind: input, shape index: {}]
  %s1 = inlined_call_operand.hbm [shape: f32[2,8,32], index: 1, kind: input, shape index: {}]
  %s2 = inlined_call_operand.vmem [shape: f32[32,64], index: 2, kind: input, shape index: {}]
  %s3 = inlined_call_operand.vmem [shape: f32[64,32], index: 3, kind: input, shape index: {}]
  %s4 = inlined_call_operand.hbm [shape: f32[32,64], index: 4, kind: input, shape index: {}]
  %s5 = inlined_call_operand.vmem [shape: f32[64,128], index: 5, kind: input, shape index: {}]
  %s6 = inlined_call_operand.vmem [shape: f32[1,128], index: 6, kind: input, shape index: {}]
  %s7 = inlined_call_operand.hbm [shape: f32[2,8,128], index: 7, kind: output, shape index: {0}]
  %s8 = inlined_call_operand.hbm [shape: f32[2,8,128], index: 8, kind: output, shape index: {1}]
  %9 = xla_tuple %s7, %s8
  %s10 = sld [smem:[#allocation0]]
  $region81: #{tpu_custom_call.1} parent=0
    _
  %s12 = ssub.s32 1, %s10
  %s13 = scalar_select 0, %s12, %s10
  $region1: #{tpu_custom_call.1} parent=0
    #allocation2 [shape = 'u8[8192]{0}', space=vmem, size = 0x2000, scoped, tag = 'input window, operand 0']
    #allocation3 [shape = 's32[2]{0}', space=sflag, size = 0x8, scoped, tag = 'scoped memory for tpu_custom_call.1']
    #allocation4 [shape = 's32[2]{0}', space=sflag, size = 0x8, scoped, tag = 'scoped memory for tpu_custom_call.1']
    #allocation5 [shape = 'u8[8192]{0}', space=vmem, size = 0x2000, scoped, tag = 'input window, operand 1']
    #allocation6 [shape = 's32[2]{0}', space=sflag, size = 0x8, scoped, tag = 'scoped memory for tpu_custom_call.1']
    #allocation7 [shape = 'u8[16384]{0}', space=vmem, size = 0x4000, scoped, tag = 'input window, operand 4, single buffered']
    #allocation8 [shape = 'u8[8192]{0}', space=vmem, size = 0x2000, scoped, tag = 'output window, operand 0']
    #allocation9 [shape = 'u8[8192]{0}', space=vmem, size = 0x2000, scoped, tag = 'output window, operand 1']
    #allocation10 [shape = 's32[2]{0}', space=sflag, size = 0x8, scoped, tag = 'scoped memory for tpu_custom_call.1']
    %14 = vsyncpa [#allocation3], 0
    %s15 = scalar_lea.sflag [#allocation3], 1
    %16 = vsyncpa %s15, 0
    %17 = vsyncpa [#allocation6], 0
    %s18 = scalar_lea.sflag [#allocation6], 1
    %19 = vsyncpa %s18, 0
    %20 = vsyncpa [#allocation4], 0
    %s21 = scalar_lea.sflag [#allocation4], 1
    %22 = vsyncpa %s21, 0
    %23 = vsyncpa [#allocation10], 0
    %s24 = scalar_lea.sflag [#allocation10], 1
    %25 = vsyncpa %s24, 0
    loop: start=0, step=1, limit=4
    $region2: #{tpu_custom_call.1} parent=1 // loop_pre_header
      _
    $region3: #{tpu_custom_call.1} parent=1 // loop_header
      %s27 = sphi 0, %s31
      %p28 = scmp.ge.s32.totalorder %s27, 4
      %s37 = sphi 0, %s39
      %s40 = sphi 0, %s37
      %s41 = sphi 0, %s40
      %s57 = sphi 0, %s41
      %s63 = sphi 0, %s65
      %s66 = sphi 0, %s63
      %s67 = sphi 0, %s66
      %s83 = sphi 0, %s67
      %s87 = sphi 0, %s87
      %s89 = sphi 0, %s87
      %s90 = sphi 0, %s89
      %s104 = sphi 0, %s90
      %s108 = sphi 0, %s108
      %s110 = sphi 0, %s108
      %s111 = sphi 0, %s110
      %s125 = sphi 0, %s111
      %s129 = sphi 0, %s129
      %s131 = sphi 0, %s129
      %s132 = sphi 0, %s131
      %s146 = sphi 0, %s132
      %s150 = sphi 0, %s150
      %s152 = sphi 0, %s150
      %s153 = sphi 0, %s152
      %s167 = sphi 0, %s153
      %s171 = sphi 0, %s171
      %s173 = sphi 0, %s171
      %s174 = sphi 0, %s173
      %s188 = sphi 0, %s174
      %s194 = sphi 0, %s196
      %s197 = sphi 0, %s194
      %s198 = sphi 0, %s197
      %s214 = sphi 0, %s198
      %s220 = sphi 0, %s222
      %s223 = sphi 0, %s220
      %s224 = sphi 0, %s223
      %s240 = sphi 0, %s224
    $region4: #{tpu_custom_call.1} parent=1 // loop_header_branch
      %30 = sbr.rel (%p28) target = $region8
    $region5: #{tpu_custom_call.1} parent=1 // loop_body
      %s32 = ssub.s32 %s27, 1
      %s33 = ssub.s32 %s27, 2
      %s34 = sadd.s32 %s27, 1
      %s35 = ssub.s32 %s27, %s34
      %p36 = scmp.eq.s32.totalorder %s35, 0
      %s38 = sadd.s32 %s37, 1
      %s39 = scalar_select %p36, %s37, %s38
      %p42 = pneg %p36
      %p43 = scmp.eq.s32.totalorder %s27, 1
      %p44 = por %p42, %p43
      %p45 = scmp.ne.s32.totalorder %s37, %s40
      %p46 = scmp.eq.s32.totalorder %s27, 0
      %p47 = por %p45, %p46
      %p48 = scmp.ne.s32.totalorder %s37, %s40
      %p49 = scmp.eq.s32.totalorder %s32, 1
      %p50 = por %p48, %p49
      %p51 = scmp.ne.s32.totalorder %s40, %s41
      %p52 = scmp.eq.s32.totalorder %s32, 0
      %p53 = por %p51, %p52
      %p54 = scmp.ne.s32.totalorder %s40, %s41
      %p55 = scmp.eq.s32.totalorder %s33, 1
      %p56 = por %p54, %p55
      %p58 = scmp.ne.s32.totalorder %s41, %s57
      %p59 = scmp.eq.s32.totalorder %s33, 0
      %p60 = por %p58, %p59
      %s61 = ssub.s32 %s27, %s34
      %p62 = scmp.eq.s32.totalorder %s61, 0
      %s64 = sadd.s32 %s63, 1
      %s65 = scalar_select %p62, %s63, %s64
      %p68 = pneg %p62
      %p69 = scmp.eq.s32.totalorder %s27, 1
      %p70 = por %p68, %p69
      %p71 = scmp.ne.s32.totalorder %s63, %s66
      %p72 = scmp.eq.s32.totalorder %s27, 0
      %p73 = por %p71, %p72
      %p74 = scmp.ne.s32.totalorder %s63, %s66
      %p75 = scmp.eq.s32.totalorder %s32, 1
      %p76 = por %p74, %p75
      %p77 = scmp.ne.s32.totalorder %s66, %s67
      %p78 = scmp.eq.s32.totalorder %s32, 0
      %p79 = por %p77, %p78
      %p80 = scmp.ne.s32.totalorder %s66, %s67
      %p81 = scmp.eq.s32.totalorder %s33, 1
      %p82 = por %p80, %p81
      %p84 = scmp.ne.s32.totalorder %s67, %s83
      %p85 = scmp.eq.s32.totalorder %s33, 0
      %p86 = por %p84, %p85
      %s88 = sadd.s32 %s87, 1
      %p91 = scmp.eq.s32.totalorder %s27, 1
      %p92 = scmp.ne.s32.totalorder %s87, %s89
      %p93 = scmp.eq.s32.totalorder %s27, 0
      %p94 = por %p92, %p93
      %p95 = scmp.ne.s32.totalorder %s87, %s89
      %p96 = scmp.eq.s32.totalorder %s32, 1
      %p97 = por %p95, %p96
      %p98 = scmp.ne.s32.totalorder %s89, %s90
      %p99 = scmp.eq.s32.totalorder %s32, 0
      %p100 = por %p98, %p99
      %p101 = scmp.ne.s32.totalorder %s89, %s90
      %p102 = scmp.eq.s32.totalorder %s33, 1
      %p103 = por %p101, %p102
      %p105 = scmp.ne.s32.totalorder %s90, %s104
      %p106 = scmp.eq.s32.totalorder %s33, 0
      %p107 = por %p105, %p106
      %s109 = sadd.s32 %s108, 1
      %p112 = scmp.eq.s32.totalorder %s27, 1
      %p113 = scmp.ne.s32.totalorder %s108, %s110
      %p114 = scmp.eq.s32.totalorder %s27, 0
      %p115 = por %p113, %p114
      %p116 = scmp.ne.s32.totalorder %s108, %s110
      %p117 = scmp.eq.s32.totalorder %s32, 1
      %p118 = por %p116, %p117
      %p119 = scmp.ne.s32.totalorder %s110, %s111
      %p120 = scmp.eq.s32.totalorder %s32, 0
      %p121 = por %p119, %p120
      %p122 = scmp.ne.s32.totalorder %s110, %s111
      %p123 = scmp.eq.s32.totalorder %s33, 1
      %p124 = por %p122, %p123
      %p126 = scmp.ne.s32.totalorder %s111, %s125
      %p127 = scmp.eq.s32.totalorder %s33, 0
      %p128 = por %p126, %p127
      %s130 = sadd.s32 %s129, 1
      %p133 = scmp.eq.s32.totalorder %s27, 1
      %p134 = scmp.ne.s32.totalorder %s129, %s131
      %p135 = scmp.eq.s32.totalorder %s27, 0
      %p136 = por %p134, %p135
      %p137 = scmp.ne.s32.totalorder %s129, %s131
      %p138 = scmp.eq.s32.totalorder %s32, 1
      %p139 = por %p137, %p138
      %p140 = scmp.ne.s32.totalorder %s131, %s132
      %p141 = scmp.eq.s32.totalorder %s32, 0
      %p142 = por %p140, %p141
      %p143 = scmp.ne.s32.totalorder %s131, %s132
      %p144 = scmp.eq.s32.totalorder %s33, 1
      %p145 = por %p143, %p144
      %p147 = scmp.ne.s32.totalorder %s132, %s146
      %p148 = scmp.eq.s32.totalorder %s33, 0
      %p149 = por %p147, %p148
      %s151 = sadd.s32 %s150, 1
      %p154 = scmp.eq.s32.totalorder %s27, 1
      %p155 = scmp.ne.s32.totalorder %s150, %s152
      %p156 = scmp.eq.s32.totalorder %s27, 0
      %p157 = por %p155, %p156
      %p158 = scmp.ne.s32.totalorder %s150, %s152
      %p159 = scmp.eq.s32.totalorder %s32, 1
      %p160 = por %p158, %p159
      %p161 = scmp.ne.s32.totalorder %s152, %s153
      %p162 = scmp.eq.s32.totalorder %s32, 0
      %p163 = por %p161, %p162
      %p164 = scmp.ne.s32.totalorder %s152, %s153
      %p165 = scmp.eq.s32.totalorder %s33, 1
      %p166 = por %p164, %p165
      %p168 = scmp.ne.s32.totalorder %s153, %s167
      %p169 = scmp.eq.s32.totalorder %s33, 0
      %p170 = por %p168, %p169
      %s172 = sadd.s32 %s171, 1
      %p175 = scmp.eq.s32.totalorder %s27, 1
      %p176 = scmp.ne.s32.totalorder %s171, %s173
      %p177 = scmp.eq.s32.totalorder %s27, 0
      %p178 = por %p176, %p177
      %p179 = scmp.ne.s32.totalorder %s171, %s173
      %p180 = scmp.eq.s32.totalorder %s32, 1
      %p181 = por %p179, %p180
      %p182 = scmp.ne.s32.totalorder %s173, %s174
      %p183 = scmp.eq.s32.totalorder %s32, 0
      %p184 = por %p182, %p183
      %p185 = scmp.ne.s32.totalorder %s173, %s174
      %p186 = scmp.eq.s32.totalorder %s33, 1
      %p187 = por %p185, %p186
      %p189 = scmp.ne.s32.totalorder %s174, %s188
      %p190 = scmp.eq.s32.totalorder %s33, 0
      %p191 = por %p189, %p190
      %s192 = ssub.s32 %s27, %s34
      %p193 = scmp.eq.s32.totalorder %s192, 0
      %s195 = sadd.s32 %s194, 1
      %s196 = scalar_select %p193, %s194, %s195
      %p199 = pneg %p193
      %p200 = scmp.eq.s32.totalorder %s27, 1
      %p201 = por %p199, %p200
      %p202 = scmp.ne.s32.totalorder %s194, %s197
      %p203 = scmp.eq.s32.totalorder %s27, 0
      %p204 = por %p202, %p203
      %p205 = scmp.ne.s32.totalorder %s194, %s197
      %p206 = scmp.eq.s32.totalorder %s32, 1
      %p207 = por %p205, %p206
      %p208 = scmp.ne.s32.totalorder %s197, %s198
      %p209 = scmp.eq.s32.totalorder %s32, 0
      %p210 = por %p208, %p209
      %p211 = scmp.ne.s32.totalorder %s197, %s198
      %p212 = scmp.eq.s32.totalorder %s33, 1
      %p213 = por %p211, %p212
      %p215 = scmp.ne.s32.totalorder %s198, %s214
      %p216 = scmp.eq.s32.totalorder %s33, 0
      %p217 = por %p215, %p216
      %s218 = ssub.s32 %s27, %s34
      %p219 = scmp.eq.s32.totalorder %s218, 0
      %s221 = sadd.s32 %s220, 1
      %s222 = scalar_select %p219, %s220, %s221
      %p225 = pneg %p219
      %p226 = scmp.eq.s32.totalorder %s27, 1
      %p227 = por %p225, %p226
      %p228 = scmp.ne.s32.totalorder %s220, %s223
      %p229 = scmp.eq.s32.totalorder %s27, 0
      %p230 = por %p228, %p229
      %p231 = scmp.ne.s32.totalorder %s220, %s223
      %p232 = scmp.eq.s32.totalorder %s32, 1
      %p233 = por %p231, %p232
      %p234 = scmp.ne.s32.totalorder %s223, %s224
      %p235 = scmp.eq.s32.totalorder %s32, 0
      %p236 = por %p234, %p235
      %p237 = scmp.ne.s32.totalorder %s223, %s224
      %p238 = scmp.eq.s32.totalorder %s33, 1
      %p239 = por %p237, %p238
      %p241 = scmp.ne.s32.totalorder %s224, %s240
      %p242 = scmp.eq.s32.totalorder %s33, 0
      %p243 = por %p241, %p242
      %p244 = scmp.le.s32.totalorder 1, %s27
      %p245 = scmp.lt.s32.totalorder %s27, 3
      %p246 = pnand %p244, %p245
      %p247 = pneg %p246
      // Predicated region
      $region9: #{tpu_custom_call.1} parent=5 // pred_check
        _
      $region10: #{tpu_custom_call.1} parent=5 // pred_check_branch
        %249 = sbr.rel (%p246) target = $region12
      $region11: #{tpu_custom_call.1} parent=5 // pred_region
        %s250 = ssub.s32 %s27, 1
        // Predicated region
        $region13: #{tpu_custom_call.1} parent=11 // pred_check
          %p251 = pneg %p100
        $region14: #{tpu_custom_call.1} parent=11 // pred_check_branch
          %253 = sbr.rel (%p251) target = $region16
        $region15: #{tpu_custom_call.1} parent=11 // pred_region
          _
        $region16: #{tpu_custom_call.1} parent=11 // pred_fallthru
          _
        // Predicated region
        $region17: #{tpu_custom_call.1} parent=11 // pred_check
          %p254 = pneg %p121
        $region18: #{tpu_custom_call.1} parent=11 // pred_check_branch
          %256 = sbr.rel (%p254) target = $region20
        $region19: #{tpu_custom_call.1} parent=11 // pred_region
          _
        $region20: #{tpu_custom_call.1} parent=11 // pred_fallthru
          _
        // Predicated region
        $region21: #{tpu_custom_call.1} parent=11 // pred_check
          %p257 = pneg %p142
        $region22: #{tpu_custom_call.1} parent=11 // pred_check_branch
          %259 = sbr.rel (%p257) target = $region24
        $region23: #{tpu_custom_call.1} parent=11 // pred_region
          %261 = vsyncadd [#allocation6], 0
          %s262 = sshll.u32 %s4, 4
          %s263 = int_to_ptr.hbm [resolvable:$true] %s262
          %s264 = sshll.u32 [#allocation7], 4
          %s265 = int_to_ptr.vmem [resolvable:$true] %s264
          %270 = dma.hbm_to_vmem [thread:$0]  %s263, 512, %s265, [#allocation6], 128, 128, 8
        $region24: #{tpu_custom_call.1} parent=11 // pred_fallthru
          _
        // Predicated region
        $region25: #{tpu_custom_call.1} parent=11 // pred_check
          %p271 = pneg %p163
        $region26: #{tpu_custom_call.1} parent=11 // pred_check_branch
          %273 = sbr.rel (%p271) target = $region28
        $region27: #{tpu_custom_call.1} parent=11 // pred_region
          _
        $region28: #{tpu_custom_call.1} parent=11 // pred_fallthru
          _
        // Predicated region
        $region29: #{tpu_custom_call.1} parent=11 // pred_check
          %p274 = pneg %p184
        $region30: #{tpu_custom_call.1} parent=11 // pred_check_branch
          %276 = sbr.rel (%p274) target = $region32
        $region31: #{tpu_custom_call.1} parent=11 // pred_region
          _
        $region32: #{tpu_custom_call.1} parent=11 // pred_fallthru
          _
      $region12: #{tpu_custom_call.1} parent=5 // pred_fallthru
        _
      %p277 = scmp.lt.s32.totalorder %s27, 2
      // Predicated region
      $region33: #{tpu_custom_call.1} parent=5 // pred_check
        %p278 = pneg %p277
      $region34: #{tpu_custom_call.1} parent=5 // pred_check_branch
        %280 = sbr.rel (%p278) target = $region36
      $region35: #{tpu_custom_call.1} parent=5 // pred_region
        // Predicated region
        $region37: #{tpu_custom_call.1} parent=35 // pred_check
          %p281 = pneg %p47
        $region38: #{tpu_custom_call.1} parent=35 // pred_check_branch
          %283 = sbr.rel (%p281) target = $region40
        $region39: #{tpu_custom_call.1} parent=35 // pred_region
          %s284 = sand.u32 %s37, 1
          %s285 = scalar_lea.sflag [#allocation3], %s284
          %s286 = sand.u32 %s37, 1
          %s287 = smul.addr %s286, 8
          %s288 = scalar_lea.vmem [#allocation2], %s287
          %290 = vsyncadd %s285, 0
          %s291 = smul.addr %s27, 8
          %s292 = scalar_lea.hbm %s0, %s291
          %s294 = sshll.u32 %s292, 4
          %s295 = int_to_ptr.hbm [resolvable:$true] %s294
          %s296 = sshll.u32 %s288, 4
          %s297 = int_to_ptr.vmem [resolvable:$true] %s296
          %299 = dma.hbm_to_vmem [thread:$0]  %s295, 128, %s297, %s285
        $region40: #{tpu_custom_call.1} parent=35 // pred_fallthru
          _
        // Predicated region
        $region41: #{tpu_custom_call.1} parent=35 // pred_check
          %p300 = pneg %p73
        $region42: #{tpu_custom_call.1} parent=35 // pred_check_branch
          %302 = sbr.rel (%p300) target = $region44
        $region43: #{tpu_custom_call.1} parent=35 // pred_region
          %s303 = sand.u32 %s27, 1
          %s304 = scalar_lea.sflag [#allocation6], %s303
          %s305 = sand.u32 %s63, 1
          %s306 = smul.addr %s305, 8
          %s307 = scalar_lea.vmem [#allocation5], %s306
          %309 = vsyncadd %s304, 0
          %s310 = smul.addr %s27, 8
          %s311 = scalar_lea.hbm %s1, %s310
          %s313 = sshll.u32 %s311, 4
          %s314 = int_to_ptr.hbm [resolvable:$true] %s313
          %s315 = sshll.u32 %s307, 4
          %s316 = int_to_ptr.vmem [resolvable:$true] %s315
          %318 = dma.hbm_to_vmem [thread:$0]  %s314, 128, %s316, %s304
        $region44: #{tpu_custom_call.1} parent=35 // pred_fallthru
          _
      $region36: #{tpu_custom_call.1} parent=5 // pred_fallthru
        _
      %p319 = scmp.le.s32.totalorder 1, %s27
      %p320 = scmp.lt.s32.totalorder %s27, 3
      %p321 = pnand %p319, %p320
      %p322 = pneg %p321
      // Predicated region
      $region45: #{tpu_custom_call.1} parent=5 // pred_check
        _
      $region46: #{tpu_custom_call.1} parent=5 // pred_check_branch
        %324 = sbr.rel (%p321) target = $region48
      $region47: #{tpu_custom_call.1} parent=5 // pred_region
        %s325 = ssub.s32 %s27, 1
        %s326 = sand.u32 %s40, 1
        %s327 = scalar_lea.sflag [#allocation3], %s326
        %s328 = sand.u32 %s40, 1
        %s329 = smul.addr %s328, 8
        %s330 = scalar_lea.vmem [#allocation2], %s329
        // Predicated region
        $region49: #{tpu_custom_call.1} parent=47 // pred_check
          %p331 = pneg %p53
        $region50: #{tpu_custom_call.1} parent=47 // pred_check_branch
          %333 = sbr.rel (%p331) target = $region52
        $region51: #{tpu_custom_call.1} parent=47 // pred_region
          %335 = dma.done %s327, 128
        $region52: #{tpu_custom_call.1} parent=47 // pred_fallthru
          _
        %s336 = sand.u32 %s32, 1
        %s337 = scalar_lea.sflag [#allocation6], %s336
        %s338 = sand.u32 %s66, 1
        %s339 = smul.addr %s338, 8
        %s340 = scalar_lea.vmem [#allocation5], %s339
        // Predicated region
        $region53: #{tpu_custom_call.1} parent=47 // pred_check
          %p341 = pneg %p79
        $region54: #{tpu_custom_call.1} parent=47 // pred_check_branch
          %343 = sbr.rel (%p341) target = $region56
        $region55: #{tpu_custom_call.1} parent=47 // pred_region
          %345 = dma.done %s337, 128
        $region56: #{tpu_custom_call.1} parent=47 // pred_fallthru
          _
        // Predicated region
        $region57: #{tpu_custom_call.1} parent=47 // pred_check
          %p346 = pneg %p142
        $region58: #{tpu_custom_call.1} parent=47 // pred_check_branch
          %348 = sbr.rel (%p346) target = $region60
        $region59: #{tpu_custom_call.1} parent=47 // pred_region
          %350 = dma.done [#allocation6], 512
        $region60: #{tpu_custom_call.1} parent=47 // pred_fallthru
          _
        %s351 = sand.u32 %s40, 1
        %s352 = scalar_lea.sflag [#allocation3], %s351
        %s353 = sand.u32 %s40, 1
        %s354 = smul.addr %s353, 8
        %s355 = scalar_lea.vmem [#allocation2], %s354
        %p356 = pneg %p53
        %p357 = pneg %p50
        %s358 = sand.u32 %s32, 1
        %s359 = scalar_lea.sflag [#allocation6], %s358
        %s360 = sand.u32 %s66, 1
        %s361 = smul.addr %s360, 8
        %s362 = scalar_lea.vmem [#allocation5], %s361
        %p363 = pneg %p79
        %p364 = pneg %p76
        %p365 = pneg %p100
        %p366 = pneg %p97
        %p367 = pneg %p121
        %p368 = pneg %p118
        %p369 = pneg %p142
        %p370 = pneg %p139
        %p371 = pneg %p163
        %p372 = pneg %p160
        %p373 = pneg %p184
        %p374 = pneg %p181
        %p375 = pneg %p210
        %p376 = pneg %p207
        %s377 = sand.u32 %s197, 1
        %s378 = scalar_lea.sflag [#allocation4], %s377
        %s379 = sand.u32 %s197, 1
        %s380 = smul.addr %s379, 8
        %s381 = scalar_lea.vmem [#allocation8], %s380
        %p382 = pneg %p236
        %p383 = pneg %p233
        %s384 = sand.u32 %s223, 1
        %s385 = scalar_lea.sflag [#allocation10], %s384
        %s386 = sand.u32 %s223, 1
        %s387 = smul.addr %s386, 8
        %s388 = scalar_lea.vmem [#allocation9], %s387
        %v389 = vld [vmem:[%s330] sm:$0xff]
        %v390 = vld [vmem:[%s340] sm:$0xff]
        %v391 = vld [vmem:[%s2] sm:$0xff]
        %v392 = vld [vmem:[%s2 + $0x8] sm:$0xff]
        %v393 = vld [vmem:[%s2 + $0x10] sm:$0xff]
        %v394 = vld [vmem:[%s2 + $0x18] sm:$0xff]
        %v395 = vld [vmem:[%s3] sm:$0xff]
        %v396 = vld [vmem:[%s3 + $0x8] sm:$0xff]
        %v397 = vld [vmem:[%s3 + $0x10] sm:$0xff]
        %v398 = vld [vmem:[%s3 + $0x18] sm:$0xff]
        %v399 = vld [vmem:[%s3 + $0x20] sm:$0xff]
        %v400 = vld [vmem:[%s3 + $0x28] sm:$0xff]
        %v401 = vld [vmem:[%s3 + $0x30] sm:$0xff]
        %v402 = vld [vmem:[%s3 + $0x38] sm:$0xff]
        %v403 = vld [vmem:[#allocation7] sm:$0xff]
        %v404 = vld [vmem:[#allocation7 + $0x8] sm:$0xff]
        %v405 = vld [vmem:[#allocation7 + $0x10] sm:$0xff]
        %v406 = vld [vmem:[#allocation7 + $0x18] sm:$0xff]
        %v407 = vld [vmem:[%s5] sm:$0xff]
        %v408 = vld [vmem:[%s5 + $0x8] sm:$0xff]
        %v409 = vld [vmem:[%s5 + $0x10] sm:$0xff]
        %v410 = vld [vmem:[%s5 + $0x18] sm:$0xff]
        %v411 = vld [vmem:[%s5 + $0x20] sm:$0xff]
        %v412 = vld [vmem:[%s5 + $0x28] sm:$0xff]
        %v413 = vld [vmem:[%s5 + $0x30] sm:$0xff]
        %v414 = vld [vmem:[%s5 + $0x38] sm:$0xff]
        %vm415 = vcmask 261120
        %v417 = vsel %vm415, %v389, 0
        %419 = vmatpush.msra.mxu0 0.0
        %420 = vmatpush.msra.mxu0 0.0
        %421 = vmatpush.msra.mxu0 0.0
        %422 = vmatpush.msra.mxu0 0.0
        %423 = vmatpush.msra.mxu0 0.0
        %424 = vmatpush.msra.mxu0 0.0
        %425 = vmatpush.msra.mxu0 0.0
        %426 = vmatpush.msra.mxu0 0.0
        %427 = vmatpush.msra.mxu0 0.0
        %428 = vmatpush.msra.mxu0 0.0
        %429 = vmatpush.msra.mxu0 0.0
        %430 = vmatpush.msra.mxu0 0.0
        %431 = vmatpush.msra.mxu0 %v394
        %432 = vmatpush.msra.mxu0 %v393
        %433 = vmatpush.msra.mxu0 %v392
        %434 = vmatpush.msra.mxu0 %v391
        %435 = vmatmul.f32.gmra.mxu0 %v417
        %v436 = vpop.f32.mrf.mxu0
        %v437 = vadd.f32 0.0, %v436
        %438 = vdwg.mxu0
        %v440 = vsel %vm415, %v395, 0
        %v443 = vsel %vm415, %v396, 0
        %v446 = vsel %vm415, %v397, 0
        %v449 = vsel %vm415, %v398, 0
        %v452 = vsel %vm415, %v399, 0
        %v455 = vsel %vm415, %v400, 0
        %v458 = vsel %vm415, %v401, 0
        %v461 = vsel %vm415, %v402, 0
        %v464 = vsel %vm415, %v390, 0
        %466 = vmatpush.xpose.msra.mxu0 0.0
        %467 = vmatpush.xpose.msra.mxu0 0.0
        %468 = vmatpush.xpose.msra.mxu0 0.0
        %469 = vmatpush.xpose.msra.mxu0 0.0
        %470 = vmatpush.xpose.msra.mxu0 0.0
        %471 = vmatpush.xpose.msra.mxu0 0.0
        %472 = vmatpush.xpose.msra.mxu0 0.0
        %473 = vmatpush.xpose.msra.mxu0 0.0
        %474 = vmatpush.xpose.msra.mxu0 0.0
        %475 = vmatpush.xpose.msra.mxu0 0.0
        %476 = vmatpush.xpose.msra.mxu0 0.0
        %477 = vmatpush.xpose.msra.mxu0 0.0
        %478 = vmatpush.xpose.msra.mxu0 0.0
        %479 = vmatpush.xpose.msra.mxu0 0.0
        %480 = vmatpush.xpose.msra.mxu0 0.0
        %481 = vmatpush.xpose.msra.mxu0 %v464
        %482 = vmatmul.f32.gmra.mxu0 %v440
        %v483 = vpop.f32.mrf.mxu0
        %v484 = vadd.f32 0.0, %v483
        %485 = vmatmul.f32.gmra.mxu0 %v443
        %v486 = vpop.f32.mrf.mxu0
        %v487 = vadd.f32 0.0, %v486
        %488 = vmatmul.f32.gmra.mxu0 %v446
        %v489 = vpop.f32.mrf.mxu0
        %v490 = vadd.f32 0.0, %v489
        %491 = vmatmul.f32.gmra.mxu0 %v449
        %v492 = vpop.f32.mrf.mxu0
        %v493 = vadd.f32 0.0, %v492
        %494 = vmatmul.f32.gmra.mxu0 %v452
        %v495 = vpop.f32.mrf.mxu0
        %v496 = vadd.f32 0.0, %v495
        %497 = vmatmul.f32.gmra.mxu0 %v455
        %v498 = vpop.f32.mrf.mxu0
        %v499 = vadd.f32 0.0, %v498
        %500 = vmatmul.f32.gmra.mxu0 %v458
        %v501 = vpop.f32.mrf.mxu0
        %v502 = vadd.f32 0.0, %v501
        %503 = vmatmul.f32.gmra.mxu0 %v461
        %v504 = vpop.f32.mrf.mxu0
        %v505 = vadd.f32 0.0, %v504
        %506 = vdwg.mxu0
        %507 = vmatpush.msra.mxu0 0.0
        %508 = vmatpush.msra.mxu0 0.0
        %509 = vmatpush.msra.mxu0 0.0
        %510 = vmatpush.msra.mxu0 0.0
        %511 = vmatpush.msra.mxu0 0.0
        %512 = vmatpush.msra.mxu0 0.0
        %513 = vmatpush.msra.mxu0 0.0
        %514 = vmatpush.msra.mxu0 0.0
        %515 = vmatpush.msra.mxu0 0.0
        %516 = vmatpush.msra.mxu0 0.0
        %517 = vmatpush.msra.mxu0 0.0
        %518 = vmatpush.msra.mxu0 0.0
        %519 = vmatpush.msra.mxu0 %v406
        %520 = vmatpush.msra.mxu0 %v405
        %521 = vmatpush.msra.mxu0 %v404
        %522 = vmatpush.msra.mxu0 %v403
        %523 = vmatmul.f32.gmra.mxu0 %v464
        %v524 = vpop.f32.mrf.mxu0
        %v525 = vadd.f32 0.0, %v524
        %526 = vdwg.mxu0
        %vm527 = vcmask 130048
        %v529 = vsel %vm527, %v437, 0
        %531 = vmatpush.msra.mxu0 0.0
        %532 = vmatpush.msra.mxu0 0.0
        %533 = vmatpush.msra.mxu0 0.0
        %534 = vmatpush.msra.mxu0 0.0
        %535 = vmatpush.msra.mxu0 0.0
        %536 = vmatpush.msra.mxu0 0.0
        %537 = vmatpush.msra.mxu0 0.0
        %538 = vmatpush.msra.mxu0 0.0
        %539 = vmatpush.msra.mxu0 0.0
        %540 = vmatpush.msra.mxu0 0.0
        %541 = vmatpush.msra.mxu0 0.0
        %542 = vmatpush.msra.mxu0 0.0
        %543 = vmatpush.msra.mxu0 0.0
        %544 = vmatpush.msra.mxu0 0.0
        %545 = vmatpush.msra.mxu0 %v487
        %546 = vmatpush.msra.mxu0 %v484
        %547 = vmatmul.f32.gmra.mxu0 %v529
        %v548 = vpop.f32.mrf.mxu0
        %v549 = vadd.f32 0.0, %v548
        %550 = vdwg.mxu0
        %vm551 = vcmask 64512
        %v552 = vsel %vm551, %v549, -inf
        %v553 = vrot.slane %v552, 4
        %v554 = vmax.f32 %v552, %v553
        %v555 = vrot.slane %v554, 2
        %v556 = vmax.f32 %v554, %v555
        %v557 = vrot.slane %v556, 1
        %v558 = vmax.f32 %v556, %v557
        %v559 = vsub.f32 %v549, %v558
        %v560 = vmul.f32 %v559, 1.442695
        %v561 = vpow.pop %v560
        %v562 = vsel %vm551, %v561, 0.0
        %v563 = vrot.slane %v562, 4
        %v564 = vadd.f32 %v562, %v563
        %v565 = vrot.slane %v564, 2
        %v566 = vadd.f32 %v564, %v565
        %v567 = vrot.slane %v566, 1
        %v568 = vadd.f32 %v566, %v567
        %v569 = vrcp.pop %v568
        %v570 = vmul.f32 %v568, %v569
        %v571 = vsub.f32 1.0, %v570
        %v572 = vmul.f32 %v569, %v571
        %v573 = vadd.f32 %v569, %v572
        %vm574 = vweird.f32 %v568
        %vm575 = vweird.f32 %v569
        %vm576 = vmor %vm574, %vm575
        %v577 = vsel %vm576, %v569, %v573
        %v578 = vand.u32 2147483647, %v568
        %vm579 = vcmp.eq.f32.partialorder %v578, 8.507059e+37
        %v580 = vand.u32 %v568, 2147483648
        %v581 = vor.u32 1.1754944e-38, %v580
        %v582 = vsel %vm579, %v581, %v577
        %v583 = vmul.f32 1.0, %v582
        %v584 = vmul.f32 %v561, %v583
        %v585 = vsel %vm551, %v584, 0.0
        %586 = vadd.xlane.f32.xlu0 %v585
        %v587 = vpop.xlane.xlu0 %586
        %v588 = vadd.f32 %v587, 1e-07
        %v589 = vrcp.pop %v588
        %v590 = vmul.f32 %v588, %v589
        %v591 = vsub.f32 1.0, %v590
        %v592 = vmul.f32 %v589, %v591
        %v593 = vadd.f32 %v589, %v592
        %vm594 = vweird.f32 %v588
        %vm595 = vweird.f32 %v589
        %vm596 = vmor %vm594, %vm595
        %v597 = vsel %vm596, %v589, %v593
        %v598 = vand.u32 2147483647, %v588
        %vm599 = vcmp.eq.f32.partialorder %v598, 8.507059e+37
        %v600 = vand.u32 %v588, 2147483648
        %v601 = vor.u32 1.1754944e-38, %v600
        %v602 = vsel %vm599, %v601, %v597
        %v603 = vmul.f32 1.0, %v602
        %v604 = vmul.f32 %v584, %v603
        %v606 = vsel %vm551, %v604, 0
        %608 = vmatpush.msra.mxu0 0.0
        %609 = vmatpush.msra.mxu0 0.0
        %610 = vmatpush.msra.mxu0 0.0
        %611 = vmatpush.msra.mxu0 0.0
        %612 = vmatpush.msra.mxu0 0.0
        %613 = vmatpush.msra.mxu0 0.0
        %614 = vmatpush.msra.mxu0 0.0
        %615 = vmatpush.msra.mxu0 0.0
        %616 = vmatpush.msra.mxu0 0.0
        %617 = vmatpush.msra.mxu0 0.0
        %618 = vmatpush.msra.mxu0 0.0
        %619 = vmatpush.msra.mxu0 0.0
        %620 = vmatpush.msra.mxu0 0.0
        %621 = vmatpush.msra.mxu0 0.0
        %622 = vmatpush.msra.mxu0 0.0
        %623 = vmatpush.msra.mxu0 %v525
        %624 = vmatmul.f32.gmra.mxu0 %v606
        %v625 = vpop.f32.mrf.mxu0
        %v626 = vadd.f32 0.0, %v625
        %627 = vdwg.mxu0
        %628 = vrot.lane.b32.xlu0 %v437, 112
        %v629 = vpop.permute.xlu0 %628
        %v630 = vsel %vm527, %v629, 0
        %632 = vmatpush.msra.mxu0 0.0
        %633 = vmatpush.msra.mxu0 0.0
        %634 = vmatpush.msra.mxu0 0.0
        %635 = vmatpush.msra.mxu0 0.0
        %636 = vmatpush.msra.mxu0 0.0
        %637 = vmatpush.msra.mxu0 0.0
        %638 = vmatpush.msra.mxu0 0.0
        %639 = vmatpush.msra.mxu0 0.0
        %640 = vmatpush.msra.mxu0 0.0
        %641 = vmatpush.msra.mxu0 0.0
        %642 = vmatpush.msra.mxu0 0.0
        %643 = vmatpush.msra.mxu0 0.0
        %644 = vmatpush.msra.mxu0 0.0
        %645 = vmatpush.msra.mxu0 0.0
        %646 = vmatpush.msra.mxu0 %v493
        %647 = vmatpush.msra.mxu0 %v490
        %648 = vmatmul.f32.gmra.mxu0 %v630
        %v649 = vpop.f32.mrf.mxu0
        %v650 = vadd.f32 0.0, %v649
        %651 = vdwg.mxu0
        %v652 = vsel %vm551, %v650, -inf
        %v653 = vrot.slane %v652, 4
        %v654 = vmax.f32 %v652, %v653
        %v655 = vrot.slane %v654, 2
        %v656 = vmax.f32 %v654, %v655
        %v657 = vrot.slane %v656, 1
        %v658 = vmax.f32 %v656, %v657
        %v659 = vsub.f32 %v650, %v658
        %v660 = vmul.f32 %v659, 1.442695
        %v661 = vpow.pop %v660
        %v662 = vsel %vm551, %v661, 0.0
        %v663 = vrot.slane %v662, 4
        %v664 = vadd.f32 %v662, %v663
        %v665 = vrot.slane %v664, 2
        %v666 = vadd.f32 %v664, %v665
        %v667 = vrot.slane %v666, 1
        %v668 = vadd.f32 %v666, %v667
        %v669 = vrcp.pop %v668
        %v670 = vmul.f32 %v668, %v669
        %v671 = vsub.f32 1.0, %v670
        %v672 = vmul.f32 %v669, %v671
        %v673 = vadd.f32 %v669, %v672
        %vm674 = vweird.f32 %v668
        %vm675 = vweird.f32 %v669
        %vm676 = vmor %vm674, %vm675
        %v677 = vsel %vm676, %v669, %v673
        %v678 = vand.u32 2147483647, %v668
        %vm679 = vcmp.eq.f32.partialorder %v678, 8.507059e+37
        %v680 = vand.u32 %v668, 2147483648
        %v681 = vor.u32 1.1754944e-38, %v680
        %v682 = vsel %vm679, %v681, %v677
        %v683 = vmul.f32 1.0, %v682
        %v684 = vmul.f32 %v661, %v683
        %v685 = vsel %vm551, %v684, 0.0
        %686 = vadd.xlane.f32.xlu0 %v685
        %v687 = vpop.xlane.xlu0 %686
        %v688 = vadd.f32 %v687, 1e-07
        %v689 = vrcp.pop %v688
        %v690 = vmul.f32 %v688, %v689
        %v691 = vsub.f32 1.0, %v690
        %v692 = vmul.f32 %v689, %v691
        %v693 = vadd.f32 %v689, %v692
        %vm694 = vweird.f32 %v688
        %vm695 = vweird.f32 %v689
        %vm696 = vmor %vm694, %vm695
        %v697 = vsel %vm696, %v689, %v693
        %v698 = vand.u32 2147483647, %v688
        %vm699 = vcmp.eq.f32.partialorder %v698, 8.507059e+37
        %v700 = vand.u32 %v688, 2147483648
        %v701 = vor.u32 1.1754944e-38, %v700
        %v702 = vsel %vm699, %v701, %v697
        %v703 = vmul.f32 1.0, %v702
        %v704 = vmul.f32 %v684, %v703
        %v705 = vmax.f32 %v604, %v704
        %707 = vrot.lane.b32.xlu0 %v525, 112
        %v708 = vpop.permute.xlu0 %707
        %v711 = vsel %vm551, %v704, 0
        %713 = vmatpush.msra.mxu0 0.0
        %714 = vmatpush.msra.mxu0 0.0
        %715 = vmatpush.msra.mxu0 0.0
        %716 = vmatpush.msra.mxu0 0.0
        %717 = vmatpush.msra.mxu0 0.0
        %718 = vmatpush.msra.mxu0 0.0
        %719 = vmatpush.msra.mxu0 0.0
        %720 = vmatpush.msra.mxu0 0.0
        %721 = vmatpush.msra.mxu0 0.0
        %722 = vmatpush.msra.mxu0 0.0
        %723 = vmatpush.msra.mxu0 0.0
        %724 = vmatpush.msra.mxu0 0.0
        %725 = vmatpush.msra.mxu0 0.0
        %726 = vmatpush.msra.mxu0 0.0
        %727 = vmatpush.msra.mxu0 0.0
        %728 = vmatpush.msra.mxu0 %v708
        %729 = vmatmul.f32.gmra.mxu0 %v711
        %v730 = vpop.f32.mrf.mxu0
        %v731 = vadd.f32 0.0, %v730
        %732 = vdwg.mxu0
        %733 = vrot.lane.b32.xlu0 %v437, 96
        %v734 = vpop.permute.xlu0 %733
        %v735 = vsel %vm527, %v734, 0
        %737 = vmatpush.msra.mxu0 0.0
        %738 = vmatpush.msra.mxu0 0.0
        %739 = vmatpush.msra.mxu0 0.0
        %740 = vmatpush.msra.mxu0 0.0
        %741 = vmatpush.msra.mxu0 0.0
        %742 = vmatpush.msra.mxu0 0.0
        %743 = vmatpush.msra.mxu0 0.0
        %744 = vmatpush.msra.mxu0 0.0
        %745 = vmatpush.msra.mxu0 0.0
        %746 = vmatpush.msra.mxu0 0.0
        %747 = vmatpush.msra.mxu0 0.0
        %748 = vmatpush.msra.mxu0 0.0
        %749 = vmatpush.msra.mxu0 0.0
        %750 = vmatpush.msra.mxu0 0.0
        %751 = vmatpush.msra.mxu0 %v499
        %752 = vmatpush.msra.mxu0 %v496
        %753 = vmatmul.f32.gmra.mxu0 %v735
        %v754 = vpop.f32.mrf.mxu0
        %v755 = vadd.f32 0.0, %v754
        %756 = vdwg.mxu0
        %v757 = vsel %vm551, %v755, -inf
        %v758 = vrot.slane %v757, 4
        %v759 = vmax.f32 %v757, %v758
        %v760 = vrot.slane %v759, 2
        %v761 = vmax.f32 %v759, %v760
        %v762 = vrot.slane %v761, 1
        %v763 = vmax.f32 %v761, %v762
        %v764 = vsub.f32 %v755, %v763
        %v765 = vmul.f32 %v764, 1.442695
        %v766 = vpow.pop %v765
        %v767 = vsel %vm551, %v766, 0.0
        %v768 = vrot.slane %v767, 4
        %v769 = vadd.f32 %v767, %v768
        %v770 = vrot.slane %v769, 2
        %v771 = vadd.f32 %v769, %v770
        %v772 = vrot.slane %v771, 1
        %v773 = vadd.f32 %v771, %v772
        %v774 = vrcp.pop %v773
        %v775 = vmul.f32 %v773, %v774
        %v776 = vsub.f32 1.0, %v775
        %v777 = vmul.f32 %v774, %v776
        %v778 = vadd.f32 %v774, %v777
        %vm779 = vweird.f32 %v773
        %vm780 = vweird.f32 %v774
        %vm781 = vmor %vm779, %vm780
        %v782 = vsel %vm781, %v774, %v778
        %v783 = vand.u32 2147483647, %v773
        %vm784 = vcmp.eq.f32.partialorder %v783, 8.507059e+37
        %v785 = vand.u32 %v773, 2147483648
        %v786 = vor.u32 1.1754944e-38, %v785
        %v787 = vsel %vm784, %v786, %v782
        %v788 = vmul.f32 1.0, %v787
        %v789 = vmul.f32 %v766, %v788
        %v790 = vsel %vm551, %v789, 0.0
        %791 = vadd.xlane.f32.xlu0 %v790
        %v792 = vpop.xlane.xlu0 %791
        %v793 = vadd.f32 %v792, 1e-07
        %v794 = vrcp.pop %v793
        %v795 = vmul.f32 %v793, %v794
        %v796 = vsub.f32 1.0, %v795
        %v797 = vmul.f32 %v794, %v796
        %v798 = vadd.f32 %v794, %v797
        %vm799 = vweird.f32 %v793
        %vm800 = vweird.f32 %v794
        %vm801 = vmor %vm799, %vm800
        %v802 = vsel %vm801, %v794, %v798
        %v803 = vand.u32 2147483647, %v793
        %vm804 = vcmp.eq.f32.partialorder %v803, 8.507059e+37
        %v805 = vand.u32 %v793, 2147483648
        %v806 = vor.u32 1.1754944e-38, %v805
        %v807 = vsel %vm804, %v806, %v802
        %v808 = vmul.f32 1.0, %v807
        %v809 = vmul.f32 %v789, %v808
        %v810 = vmax.f32 %v705, %v809
        %811 = vrot.lane.b32.xlu0 %v525, 96
        %v812 = vpop.permute.xlu0 %811
        %v815 = vsel %vm551, %v809, 0
        %817 = vmatpush.msra.mxu0 0.0
        %818 = vmatpush.msra.mxu0 0.0
        %819 = vmatpush.msra.mxu0 0.0
        %820 = vmatpush.msra.mxu0 0.0
        %821 = vmatpush.msra.mxu0 0.0
        %822 = vmatpush.msra.mxu0 0.0
        %823 = vmatpush.msra.mxu0 0.0
        %824 = vmatpush.msra.mxu0 0.0
        %825 = vmatpush.msra.mxu0 0.0
        %826 = vmatpush.msra.mxu0 0.0
        %827 = vmatpush.msra.mxu0 0.0
        %828 = vmatpush.msra.mxu0 0.0
        %829 = vmatpush.msra.mxu0 0.0
        %830 = vmatpush.msra.mxu0 0.0
        %831 = vmatpush.msra.mxu0 0.0
        %832 = vmatpush.msra.mxu0 %v812
        %833 = vmatmul.f32.gmra.mxu0 %v815
        %v834 = vpop.f32.mrf.mxu0
        %v835 = vadd.f32 0.0, %v834
        %836 = vdwg.mxu0
        %837 = vrot.lane.b32.xlu0 %v437, 80
        %v838 = vpop.permute.xlu0 %837
        %v839 = vsel %vm527, %v838, 0
        %841 = vmatpush.msra.mxu0 0.0
        %842 = vmatpush.msra.mxu0 0.0
        %843 = vmatpush.msra.mxu0 0.0
        %844 = vmatpush.msra.mxu0 0.0
        %845 = vmatpush.msra.mxu0 0.0
        %846 = vmatpush.msra.mxu0 0.0
        %847 = vmatpush.msra.mxu0 0.0
        %848 = vmatpush.msra.mxu0 0.0
        %849 = vmatpush.msra.mxu0 0.0
        %850 = vmatpush.msra.mxu0 0.0
        %851 = vmatpush.msra.mxu0 0.0
        %852 = vmatpush.msra.mxu0 0.0
        %853 = vmatpush.msra.mxu0 0.0
        %854 = vmatpush.msra.mxu0 0.0
        %855 = vmatpush.msra.mxu0 %v505
        %856 = vmatpush.msra.mxu0 %v502
        %857 = vmatmul.f32.gmra.mxu0 %v839
        %v858 = vpop.f32.mrf.mxu0
        %v859 = vadd.f32 0.0, %v858
        %860 = vdwg.mxu0
        %v861 = vsel %vm551, %v859, -inf
        %v862 = vrot.slane %v861, 4
        %v863 = vmax.f32 %v861, %v862
        %v864 = vrot.slane %v863, 2
        %v865 = vmax.f32 %v863, %v864
        %v866 = vrot.slane %v865, 1
        %v867 = vmax.f32 %v865, %v866
        %v868 = vsub.f32 %v859, %v867
        %v869 = vmul.f32 %v868, 1.442695
        %v870 = vpow.pop %v869
        %v871 = vsel %vm551, %v870, 0.0
        %v872 = vrot.slane %v871, 4
        %v873 = vadd.f32 %v871, %v872
        %v874 = vrot.slane %v873, 2
        %v875 = vadd.f32 %v873, %v874
        %v876 = vrot.slane %v875, 1
        %v877 = vadd.f32 %v875, %v876
        %v878 = vrcp.pop %v877
        %v879 = vmul.f32 %v877, %v878
        %v880 = vsub.f32 1.0, %v879
        %v881 = vmul.f32 %v878, %v880
        %v882 = vadd.f32 %v878, %v881
        %vm883 = vweird.f32 %v877
        %vm884 = vweird.f32 %v878
        %vm885 = vmor %vm883, %vm884
        %v886 = vsel %vm885, %v878, %v882
        %v887 = vand.u32 2147483647, %v877
        %vm888 = vcmp.eq.f32.partialorder %v887, 8.507059e+37
        %v889 = vand.u32 %v877, 2147483648
        %v890 = vor.u32 1.1754944e-38, %v889
        %v891 = vsel %vm888, %v890, %v886
        %v892 = vmul.f32 1.0, %v891
        %v893 = vmul.f32 %v870, %v892
        %v894 = vsel %vm551, %v893, 0.0
        %895 = vadd.xlane.f32.xlu0 %v894
        %v896 = vpop.xlane.xlu0 %895
        %v897 = vadd.f32 %v896, 1e-07
        %v898 = vrcp.pop %v897
        %v899 = vmul.f32 %v897, %v898
        %v900 = vsub.f32 1.0, %v899
        %v901 = vmul.f32 %v898, %v900
        %v902 = vadd.f32 %v898, %v901
        %vm903 = vweird.f32 %v897
        %vm904 = vweird.f32 %v898
        %vm905 = vmor %vm903, %vm904
        %v906 = vsel %vm905, %v898, %v902
        %v907 = vand.u32 2147483647, %v897
        %vm908 = vcmp.eq.f32.partialorder %v907, 8.507059e+37
        %v909 = vand.u32 %v897, 2147483648
        %v910 = vor.u32 1.1754944e-38, %v909
        %v911 = vsel %vm908, %v910, %v906
        %v912 = vmul.f32 1.0, %v911
        %v913 = vmul.f32 %v893, %v912
        %v914 = vmax.f32 %v810, %v913
        %915 = vrot.lane.b32.xlu0 %v525, 80
        %v916 = vpop.permute.xlu0 %915
        %v919 = vsel %vm551, %v913, 0
        %921 = vmatpush.msra.mxu0 0.0
        %922 = vmatpush.msra.mxu0 0.0
        %923 = vmatpush.msra.mxu0 0.0
        %924 = vmatpush.msra.mxu0 0.0
        %925 = vmatpush.msra.mxu0 0.0
        %926 = vmatpush.msra.mxu0 0.0
        %927 = vmatpush.msra.mxu0 0.0
        %928 = vmatpush.msra.mxu0 0.0
        %929 = vmatpush.msra.mxu0 0.0
        %930 = vmatpush.msra.mxu0 0.0
        %931 = vmatpush.msra.mxu0 0.0
        %932 = vmatpush.msra.mxu0 0.0
        %933 = vmatpush.msra.mxu0 0.0
        %934 = vmatpush.msra.mxu0 0.0
        %935 = vmatpush.msra.mxu0 0.0
        %936 = vmatpush.msra.mxu0 %v916
        %937 = vmatmul.f32.gmra.mxu0 %v919
        %v938 = vpop.f32.mrf.mxu0
        %v939 = vadd.f32 0.0, %v938
        %940 = vdwg.mxu0
        %942 = vrot.lane.b32.xlu0 %v731, 16
        %v943 = vpop.permute.xlu0 %942
        %946 = vrot.lane.b32.xlu0 %v835, 32
        %v947 = vpop.permute.xlu0 %946
        %950 = vrot.lane.b32.xlu0 %v939, 48
        %v951 = vpop.permute.xlu0 %950
        %v953 = vsel %vm527, %v626, %v943
        %v954 = vsel %vm415, %v953, %v947
        %vm955 = vcmask 392192
        %v956 = vsel %vm955, %v954, %v951
        %v957 = vld [vmem:[%s6] sm:$0x1]
        %v959 = vperm.slane %v957, 0
        %vm961 = vcmask 523264
        %v963 = vsel %vm961, %v956, 0
        %965 = vmatpush.msra.mxu0 0.0
        %966 = vmatpush.msra.mxu0 0.0
        %967 = vmatpush.msra.mxu0 0.0
        %968 = vmatpush.msra.mxu0 0.0
        %969 = vmatpush.msra.mxu0 0.0
        %970 = vmatpush.msra.mxu0 0.0
        %971 = vmatpush.msra.mxu0 0.0
        %972 = vmatpush.msra.mxu0 0.0
        %973 = vmatpush.msra.mxu0 %v414
        %974 = vmatpush.msra.mxu0 %v413
        %975 = vmatpush.msra.mxu0 %v412
        %976 = vmatpush.msra.mxu0 %v411
        %977 = vmatpush.msra.mxu0 %v410
        %978 = vmatpush.msra.mxu0 %v409
        %979 = vmatpush.msra.mxu0 %v408
        %980 = vmatpush.msra.mxu0 %v407
        %981 = vmatmul.f32.gmra.mxu0 %v963
        %v982 = vpop.f32.mrf.mxu0
        %v983 = vadd.f32 %v959, %v982
        %984 = vdwg.mxu0
        %985 = vst [vmem:[%s381] sm:$0xff] %v983
        %v986 = vsel %vm551, %v914, 0.0
        %987 = vst [vmem:[%s388] sm:$0xff] %v986
        %s988 = sand.u32 %s197, 1
        %s989 = scalar_lea.sflag [#allocation4], %s988
        %s990 = sand.u32 %s197, 1
        %s991 = smul.addr %s990, 8
        %s992 = scalar_lea.vmem [#allocation8], %s991
        %s993 = sand.u32 %s223, 1
        %s994 = scalar_lea.sflag [#allocation10], %s993
        %s995 = sand.u32 %s223, 1
        %s996 = smul.addr %s995, 8
        %s997 = scalar_lea.vmem [#allocation9], %s996
        // Predicated region
        $region61: #{tpu_custom_call.1} parent=47 // pred_check
          %p998 = pneg %p207
        $region62: #{tpu_custom_call.1} parent=47 // pred_check_branch
          %1000 = sbr.rel (%p998) target = $region64
        $region63: #{tpu_custom_call.1} parent=47 // pred_region
          %1002 = vsyncadd %s989, 0
          %s1003 = smul.addr %s32, 8
          %s1004 = scalar_lea.hbm %s7, %s1003
          %s1006 = sshll.u32 %s992, 4
          %s1007 = int_to_ptr.vmem [resolvable:$true] %s1006
          %s1008 = sshll.u32 %s1004, 4
          %s1009 = int_to_ptr.hbm [resolvable:$true] %s1008
          %1011 = dma.vmem_to_hbm [thread:$0]  %s1007, 128, %s1009, %s989
        $region64: #{tpu_custom_call.1} parent=47 // pred_fallthru
          _
        // Predicated region
        $region65: #{tpu_custom_call.1} parent=47 // pred_check
          %p1012 = pneg %p233
        $region66: #{tpu_custom_call.1} parent=47 // pred_check_branch
          %1014 = sbr.rel (%p1012) target = $region68
        $region67: #{tpu_custom_call.1} parent=47 // pred_region
          %1016 = vsyncadd %s994, 0
          %s1017 = smul.addr %s32, 8
          %s1018 = scalar_lea.hbm %s8, %s1017
          %s1020 = sshll.u32 %s997, 4
          %s1021 = int_to_ptr.vmem [resolvable:$true] %s1020
          %s1022 = sshll.u32 %s1018, 4
          %s1023 = int_to_ptr.hbm [resolvable:$true] %s1022
          %1025 = dma.vmem_to_hbm [thread:$0]  %s1021, 128, %s1023, %s994
        $region68: #{tpu_custom_call.1} parent=47 // pred_fallthru
          _
      $region48: #{tpu_custom_call.1} parent=5 // pred_fallthru
        _
      %p1026 = scmp.le.s32.totalorder 2, %s27
      // Predicated region
      $region69: #{tpu_custom_call.1} parent=5 // pred_check
        %p1027 = pneg %p1026
      $region70: #{tpu_custom_call.1} parent=5 // pred_check_branch
        %1029 = sbr.rel (%p1027) target = $region72
      $region71: #{tpu_custom_call.1} parent=5 // pred_region
        %s1030 = ssub.s32 %s27, 2
        // Predicated region
        $region73: #{tpu_custom_call.1} parent=71 // pred_check
          %p1031 = pneg %p213
        $region74: #{tpu_custom_call.1} parent=71 // pred_check_branch
          %1033 = sbr.rel (%p1031) target = $region76
        $region75: #{tpu_custom_call.1} parent=71 // pred_region
          %s1034 = sand.u32 %s198, 1
          %s1035 = scalar_lea.sflag [#allocation4], %s1034
          %s1036 = sand.u32 %s198, 1
          %s1037 = smul.addr %s1036, 8
          %s1038 = scalar_lea.vmem [#allocation8], %s1037
          %1040 = dma.done %s1035, 128
        $region76: #{tpu_custom_call.1} parent=71 // pred_fallthru
          _
        // Predicated region
        $region77: #{tpu_custom_call.1} parent=71 // pred_check
          %p1041 = pneg %p239
        $region78: #{tpu_custom_call.1} parent=71 // pred_check_branch
          %1043 = sbr.rel (%p1041) target = $region80
        $region79: #{tpu_custom_call.1} parent=71 // pred_region
          %s1044 = sand.u32 %s224, 1
          %s1045 = scalar_lea.sflag [#allocation10], %s1044
          %s1046 = sand.u32 %s224, 1
          %s1047 = smul.addr %s1046, 8
          %s1048 = scalar_lea.vmem [#allocation9], %s1047
          %1050 = dma.done %s1045, 128
        $region80: #{tpu_custom_call.1} parent=71 // pred_fallthru
          _
      $region72: #{tpu_custom_call.1} parent=5 // pred_fallthru
        _
    $region6: #{tpu_custom_call.1} parent=1 // loop_footer
      %s31 = sadd.s32 1, %s27
    $region7: #{tpu_custom_call.1} parent=1 // loop_footer_branch
      %26 = sbr.rel target = $region3
    $region8: #{tpu_custom_call.1} parent=1 // loop_exit
      _
    %1051 = vsyncpa [#allocation3], 1
    %s1052 = scalar_lea.sflag [#allocation3], 1
    %1053 = vsyncpa %s1052, 1
    %1054 = vsyncpa [#allocation6], 1
    %s1055 = scalar_lea.sflag [#allocation6], 1
    %1056 = vsyncpa %s1055, 1
    %1057 = vsyncpa [#allocation4], 1
    %s1058 = scalar_lea.sflag [#allocation4], 1
    %1059 = vsyncpa %s1058, 1
    %1060 = vsyncpa [#allocation10], 1
    %s1061 = scalar_lea.sflag [#allocation10], 1
    %1062 = vsyncpa %s1061, 1

</llo_original>
